<compile_context>
chip_gen: v5e
topology: v5e:2x2
jax: 0.10.0
libtpu: 0.0.40
codegen_flags: <defaults>
</compile_context>

<pallas_src>
import jax
import jax.numpy as jnp
from jax.experimental import pallas as pl
from jax.experimental.pallas import tpu as pltpu


# -----------------------------------------------------------------------------
# Primary: aliased, zero-traffic identity.
# -----------------------------------------------------------------------------
def _identity_noop_kernel(x_ref, o_ref):
    del x_ref  # aliased with o_ref; nothing to read or compute
    # Fake read+write on the aliased output buffer: keeps ordering and stops
    # the compiler from treating the (never explicitly written) output as dead.
    pltpu.touch(o_ref)


def _aliased_identity(x: jax.Array) -> jax.Array:
    return pl.pallas_call(
        _identity_noop_kernel,
        out_shape=jax.ShapeDtypeStruct(x.shape, x.dtype),
        in_specs=[pl.BlockSpec(memory_space=pl.ANY)],   # raw HBM ref, no auto-DMA
        out_specs=pl.BlockSpec(memory_space=pl.ANY),    # raw HBM ref, no auto-DMA
        input_output_aliases={0: 0},                    # output buffer == input buffer
    )(x)


# -----------------------------------------------------------------------------
# Fallback: lane-dense tiled copy (only used if the aliased path cannot lower).
# -----------------------------------------------------------------------------
def _copy_kernel(x_ref, o_ref):
    o_ref[...] = x_ref[...]


_LANE = 128
_MAX_ROW_TILE = 1024  # 1024 x 128 f32 = 512 KiB/tile; x4 (in+out double-buffered) = 2 MiB


def _tiled_copy(x: jax.Array) -> jax.Array:
    total = x.size
    if total % _LANE == 0:
        x2 = x.reshape(total // _LANE, _LANE)  # lane-dense last dim
    else:
        x2 = x.reshape(1, total)               # degenerate: one full-array block
    rows, cols = x2.shape
    row_tile = min(rows, _MAX_ROW_TILE)
    y2 = pl.pallas_call(
        _copy_kernel,
        out_shape=jax.ShapeDtypeStruct(x2.shape, x2.dtype),
        grid=(pl.cdiv(rows, row_tile),),
        in_specs=[pl.BlockSpec((row_tile, cols), lambda i: (i, 0))],
        out_specs=pl.BlockSpec((row_tile, cols), lambda i: (i, 0)),
        compiler_params=pltpu.CompilerParams(dimension_semantics=("parallel",)),
    )(x2)
    return y2.reshape(x.shape)


def dummy_layer_norm(x: jax.Array) -> jax.Array:
    """Pallas equivalent of DummyLayerNorm.forward: returns x unchanged."""
    try:
        return _aliased_identity(x)
    except Exception:  # pragma: no cover - only if the aliased no-op can't lower
        return _tiled_copy(x)


if __name__ == "__main__":
    key = jax.random.PRNGKey(0)
    # (batch, seq, hidden): typical LayerNorm activation layout.
    x = jax.random.normal(key, (2, 8, 32), dtype=jnp.float32)
    # Host copy for verification (immune to any buffer aliasing/donation).
    x_host = jax.device_get(x)

    y = dummy_layer_norm(x)
    jax.block_until_ready(y)

    assert y.shape == x_host.shape and y.dtype == x_host.dtype
    assert bool((jax.device_get(y) == x_host).all())
    # For a true zero-copy identity in real pipelines, donate the input:
    #   y = jax.jit(dummy_layer_norm, donate_argnums=0)(x)
    print("KERNEL_OK")
</pallas_src>

<mosaic_0001>
module attributes {stable_mosaic.version = 11 : i64} {
  func.func @_identity_noop_kernel(%arg0: memref<2x8x32xf32, #tpu.memory_space<any>>, %arg1: memref<2x8x32xf32, #tpu.memory_space<any>>) attributes {dimension_semantics = [], scalar_prefetch = 0 : i64, scratch_operands = 0 : i64, tpu.core_type = #tpu.core_type<tc>} {
    return
  }
}

module attributes {stable_mosaic.version = 11 : i64} {
  func.func @_copy_kernel(%arg0: i32, %arg1: memref<4x128xf32, #tpu.memory_space<vmem>>, %arg2: memref<4x128xf32, #tpu.memory_space<vmem>>) attributes {dimension_semantics = [#tpu.dimension_semantics<parallel>], iteration_bounds = array<i64: 1>, scalar_prefetch = 0 : i64, scratch_operands = 0 : i64, tpu.core_type = #tpu.core_type<tc>, window_params = [{transform_indices = @transform_0, window_bounds = array<i64: 4, 128>}, {transform_indices = @transform_1, window_bounds = array<i64: 4, 128>}]} {
    %c0 = arith.constant 0 : index
    %c0_0 = arith.constant 0 : index
    %0 = vector.load %arg1[%c0, %c0_0] : memref<4x128xf32, #tpu.memory_space<vmem>>, vector<4x128xf32>
    %c0_1 = arith.constant 0 : index
    %c0_2 = arith.constant 0 : index
    %1 = vector.load %arg2[%c0_1, %c0_2] : memref<4x128xf32, #tpu.memory_space<vmem>>, vector<4x128xf32>
    tpu.vector_store %arg2[%c0_1, %c0_2], %0 {strides = array<i32>} : memref<4x128xf32, #tpu.memory_space<vmem>>, vector<4x128xf32>,
    return
  }
  func.func @transform_0(%arg0: i32) -> (i32, i32) {
    %c0_i32 = arith.constant 0 : i32
    %c0_i32_0 = arith.constant 0 : i32
    return %arg0, %c0_i32 : i32, i32
  }
  func.func @transform_1(%arg0: i32) -> (i32, i32) {
    %c0_i32 = arith.constant 0 : i32
    %c0_i32_0 = arith.constant 0 : i32
    return %arg0, %c0_i32 : i32, i32
  }
}

</mosaic_0001>

<llo_original>
// kernel: tpu_custom_call.1
$region0: #{tpu_custom_call.1}
  #allocation0 [shape = 'u32[]', space=smem, size = 0x4, offset = 0x4, fixed_abs, tag = 'smem constant byte address 0x4 - core index']
  #allocation1 [shape = 'u32[72,128]{1,0:T(1,128)}', space=vmem, size = 0x9000, scoped, tag = 'internal scratch']
  %s0 = inlined_call_operand.hbm [shape: f32[2,8,32], index: 0, kind: input, shape index: {}, may-alias: {0,1}]
  %s1 = inlined_call_operand.hbm [shape: f32[2,8,32], index: 1, kind: output, shape index: {}, may-alias: {0,1}]
  %s2 = sld [smem:[#allocation0]]
  $region2: #{tpu_custom_call.1} parent=0
    _
  %s4 = ssub.s32 1, %s2
  %s5 = scalar_select 0, %s4, %s2

// kernel: tpu_custom_call.1
$region0: #{tpu_custom_call.1}
  #allocation0 [shape = 'u32[]', space=smem, size = 0x4, offset = 0x4, fixed_abs, tag = 'smem constant byte address 0x4 - core index']
  #allocation1 [shape = 'u32[72,128]{1,0:T(1,128)}', space=vmem, size = 0x9000, scoped, tag = 'internal scratch']
  %s0 = inlined_call_operand.hbm [shape: f32[4,128], index: 0, kind: input, shape index: {}]
  %s1 = inlined_call_operand.hbm [shape: f32[4,128], index: 1, kind: output, shape index: {}]
  %s2 = sld [smem:[#allocation0]]
  $region18: #{tpu_custom_call.1} parent=0
    _
  %s4 = ssub.s32 1, %s2
  %s5 = scalar_select 0, %s4, %s2
  $region1: #{tpu_custom_call.1} parent=0
    #allocation2 [shape = 'u8[2048]{0}', space=vmem, size = 0x800, scoped, tag = 'input window, operand 0, single buffered']
    #allocation3 [shape = 's32[1]{0}', space=sflag, size = 0x4, scoped, tag = 'scoped memory for tpu_custom_call.1']
    #allocation4 [shape = 's32[1]{0}', space=sflag, size = 0x4, scoped, tag = 'scoped memory for tpu_custom_call.1']
    #allocation5 [shape = 'u8[2048]{0}', space=vmem, size = 0x800, scoped, tag = 'output window, operand 0, single buffered']
    %6 = vsyncpa [#allocation3], 0
    %7 = vsyncpa [#allocation4], 0
    // Predicated region
    $region2: #{tpu_custom_call.1} parent=1 // pred_check
      _
    $region3: #{tpu_custom_call.1} parent=1 // pred_check_branch
      %9 = sbr.rel (0) target = $region5
    $region4: #{tpu_custom_call.1} parent=1 // pred_region
      %11 = vsyncadd [#allocation3], 0
      %s13 = sshll.u32 %s0, 4
      %s14 = int_to_ptr.hbm [resolvable:$true] %s13
      %s15 = sshll.u32 [#allocation2], 4
      %s16 = int_to_ptr.vmem [resolvable:$true] %s15
      %18 = dma.hbm_to_vmem [thread:$0]  %s14, 64, %s16, [#allocation3]
    $region5: #{tpu_custom_call.1} parent=1 // pred_fallthru
      _
    // Predicated region
    $region6: #{tpu_custom_call.1} parent=1 // pred_check
      _
    $region7: #{tpu_custom_call.1} parent=1 // pred_check_branch
      %20 = sbr.rel (0) target = $region9
    $region8: #{tpu_custom_call.1} parent=1 // pred_region
      %22 = dma.done [#allocation3], 64
    $region9: #{tpu_custom_call.1} parent=1 // pred_fallthru
      _
    %v23 = vld [vmem:[#allocation2] sm:$0xf]
    %24 = vst [vmem:[#allocation5] sm:$0xf] %v23
    // Predicated region
    $region10: #{tpu_custom_call.1} parent=1 // pred_check
      _
    $region11: #{tpu_custom_call.1} parent=1 // pred_check_branch
      %26 = sbr.rel (0) target = $region13
    $region12: #{tpu_custom_call.1} parent=1 // pred_region
      %28 = vsyncadd [#allocation4], 0
      %s30 = sshll.u32 [#allocation5], 4
      %s31 = int_to_ptr.vmem [resolvable:$true] %s30
      %s32 = sshll.u32 %s1, 4
      %s33 = int_to_ptr.hbm [resolvable:$true] %s32
      %35 = dma.vmem_to_hbm [thread:$0]  %s31, 64, %s33, [#allocation4]
    $region13: #{tpu_custom_call.1} parent=1 // pred_fallthru
      _
    // Predicated region
    $region14: #{tpu_custom_call.1} parent=1 // pred_check
      _
    $region15: #{tpu_custom_call.1} parent=1 // pred_check_branch
      %37 = sbr.rel (0) target = $region17
    $region16: #{tpu_custom_call.1} parent=1 // pred_region
      %39 = dma.done [#allocation4], 64
    $region17: #{tpu_custom_call.1} parent=1 // pred_fallthru
      _
    %40 = vsyncpa [#allocation3], 1
    %41 = vsyncpa [#allocation4], 1

</llo_original>
